<compile_context>
chip_gen: v6e
topology: v6e:2x2x1
jax: 0.10.0
libtpu: 0.0.40
codegen_flags: <defaults>
</compile_context>

<pallas_src>
import math

import numpy as np
import jax
import jax.numpy as jnp
from jax import lax
from jax.experimental import pallas as pl
from jax.experimental.pallas import tpu as pltpu


def _round_up(a, b):
    return (a + b - 1) // b * b


# ----------------------------------------------------------------------------
# Kernel 1: flash-style dense TransformerConv.
# One (relation r, dst-tile i) per outer grid point, online softmax over src tiles j.
# ----------------------------------------------------------------------------
def _flash_conv_kernel(xq_ref, xk_ref, adj_ref,
                       wqs_ref, bqs_ref, wkv_ref, bkv_ref,
                       u_ref, m_sc, l_sc, acc_sc):
    j = pl.program_id(2)
    cout = u_ref.shape[-1]

    @pl.when(j == 0)
    def _init():
        m_sc[...] = jnp.full(m_sc.shape, -1e30, m_sc.dtype)
        l_sc[...] = jnp.zeros(l_sc.shape, l_sc.dtype)
        acc_sc[...] = jnp.zeros(acc_sc.shape, acc_sc.dtype)

    # Fused dst-side projection: [q * 1/sqrt(Cout) | skip]  (scale pre-folded into wq/bq).
    qs = jnp.dot(xq_ref[...], wqs_ref[0], preferred_element_type=jnp.float32) + bqs_ref[0]
    q = qs[:, :cout]
    # Fused src-side projection: [k | v].
    kv = jnp.dot(xk_ref[...], wkv_ref[0], preferred_element_type=jnp.float32) + bkv_ref[0]
    k = kv[:, :cout]
    v = kv[:, cout:]

    # Attention scores on the MXU: bf16 operands, f32 accumulation.  (TM, TK)
    s = lax.dot_general(q.astype(jnp.bfloat16), k.astype(jnp.bfloat16),
                        (((1,), (1,)), ((), ())),
                        preferred_element_type=jnp.float32)

    adj = adj_ref[0].astype(jnp.float32)          # (TM, TK) edge counts; 0 => no edge

    # Online softmax.  Running max uses the *unmasked* row max (softmax ratios are invariant
    # to the shift and non-edges are zeroed by the adj counts), so no (TM,TK) select is needed.
    m_prev = m_sc[...]
    m_new = jnp.maximum(m_prev, jnp.max(s, axis=-1, keepdims=True))
    alpha = jnp.exp(m_prev - m_new)
    p = jnp.exp(s - m_new) * adj                  # counts weight parallel (multi-)edges
    l_sc[...] = alpha * l_sc[...] + jnp.sum(p, axis=-1, keepdims=True)
    acc_sc[...] = alpha * acc_sc[...] + jnp.dot(
        p.astype(jnp.bfloat16), v.astype(jnp.bfloat16),
        preferred_element_type=jnp.float32)
    m_sc[...] = m_new

    @pl.when(j == pl.num_programs(2) - 1)
    def _finalize():
        skip = qs[:, cout:]
        inv = pl.reciprocal(jnp.maximum(l_sc[...], 1e-16), approx=True)
        u_ref[0] = (acc_sc[...] * inv + skip).astype(u_ref.dtype)


# ----------------------------------------------------------------------------
# Kernel 2: weighted combine over relations (semantic attention), tiled over nodes.
# ----------------------------------------------------------------------------
def _combine_kernel(coef_ref, u_ref, out_ref):
    nrel = u_ref.shape[0]
    acc = u_ref[0] * coef_ref[0]                  # (T, Cout) * (1, Cout)
    for r in range(1, nrel):                      # nrel is small & static
        acc = acc + u_ref[r] * coef_ref[r]
    out_ref[...] = acc


# ----------------------------------------------------------------------------
# Wrapper
# ----------------------------------------------------------------------------
def rgt_layer_forward(x, adj_counts, params, *, max_tile=512):
    N, cin = x.shape
    R = adj_counts.shape[0]
    cout = params["wq"].shape[1]

    # Tile / padding choice: blocks are either full-extent or (8,128)-aligned; VMEM stays O(tile^2).
    tile = _round_up(N, 8) if N <= max_tile else max_tile
    n_pad = _round_up(N, tile)
    n_tiles = n_pad // tile

    x_p = jnp.zeros((n_pad, cin), jnp.float32).at[:N, :].set(x.astype(jnp.float32))
    adj_p = jnp.zeros((R, n_pad, n_pad), jnp.float32).at[:, :N, :N].set(
        adj_counts.astype(jnp.float32)).astype(jnp.bfloat16)     # exact for counts <= 256

    # Pack + pre-transpose projection weights; fold 1/sqrt(Cout) into the query side.
    scale = 1.0 / math.sqrt(cout)
    wqs = jnp.concatenate([jnp.swapaxes(params["wq"], 1, 2) * scale,
                           jnp.swapaxes(params["ws"], 1, 2)], axis=-1)     # (R, Cin, 2*Cout)
    bqs = jnp.concatenate([params["bq"] * scale, params["bs"]], axis=-1)   # (R, 1, 2*Cout)
    wkv = jnp.concatenate([jnp.swapaxes(params["wk"], 1, 2),
                           jnp.swapaxes(params["wv"], 1, 2)], axis=-1)     # (R, Cin, 2*Cout)
    bkv = jnp.concatenate([params["bk"], params["bv"]], axis=-1)           # (R, 1, 2*Cout)

    # Explicit VMEM budget (double-buffered IO + scratch + softmax temporaries), capped for v7x.
    flash_est = (2 * (4 * tile * cin * 2 + 2 * tile * tile
                      + 4 * (2 * cin * 2 * cout + 2 * 2 * cout)
                      + 4 * tile * cout)
                 + 4 * (2 * tile + tile * cout)
                 + 4 * 3 * tile * tile)
    flash_vmem = int(min(40 << 20, max(8 << 20, 2 * flash_est)))

    u_pad = pl.pallas_call(
        _flash_conv_kernel,
        out_shape=jax.ShapeDtypeStruct((R, n_pad, cout), jnp.float32),
        grid=(R, n_tiles, n_tiles),
        in_specs=[
            pl.BlockSpec((tile, cin), lambda r, i, j: (i, 0)),             # x rows (dst side)
            pl.BlockSpec((tile, cin), lambda r, i, j: (j, 0)),             # x rows (src side)
            pl.BlockSpec((1, tile, tile), lambda r, i, j: (r, i, j)),      # adj tile (bf16)
            pl.BlockSpec((1, cin, 2 * cout), lambda r, i, j: (r, 0, 0)),   # [wq|ws]
            pl.BlockSpec((1, 1, 2 * cout), lambda r, i, j: (r, 0, 0)),     # [bq|bs]
            pl.BlockSpec((1, cin, 2 * cout), lambda r, i, j: (r, 0, 0)),   # [wk|wv]
            pl.BlockSpec((1, 1, 2 * cout), lambda r, i, j: (r, 0, 0)),     # [bk|bv]
        ],
        out_specs=pl.BlockSpec((1, tile, cout), lambda r, i, j: (r, i, 0)),
        scratch_shapes=[
            pltpu.VMEM((tile, 1), jnp.float32),       # running max
            pltpu.VMEM((tile, 1), jnp.float32),       # running denom
            pltpu.VMEM((tile, cout), jnp.float32),    # running numerator
        ],
        compiler_params=pltpu.CompilerParams(
            dimension_semantics=("parallel", "parallel", "arbitrary"),
            vmem_limit_bytes=flash_vmem,
        ),
    )(x_p, x_p, adj_p, wqs, bqs, wkv, bkv)

    # Semantic attention coefficients: only R*H scalars -> plain JAX.
    t = jnp.mean(u_pad[:, :N, :], axis=1)                        # (R, Cout)
    w = jnp.dot(t, params["wa"].T)                               # (R, H)
    a = params["prelu_a"][0]
    w = jnp.where(w > 0.0, w, a * w)                             # PReLU
    beta = jax.nn.softmax(w, axis=0)                             # softmax over relation dim
    coef = jnp.mean(beta, axis=1)                                # (R,) mean over semantic heads
    coef_b = jnp.tile(coef[:, None, None], (1, 1, cout)).astype(jnp.float32)   # (R, 1, Cout)

    combine_est = 2 * (4 * R * tile * cout + 4 * R * cout + 4 * tile * cout)
    combine_vmem = int(min(40 << 20, max(8 << 20, 2 * combine_est)))

    out_pad = pl.pallas_call(
        _combine_kernel,
        out_shape=jax.ShapeDtypeStruct((n_pad, cout), jnp.float32),
        grid=(n_tiles,),
        in_specs=[
            pl.BlockSpec((R, 1, cout), lambda i: (0, 0, 0)),
            pl.BlockSpec((R, tile, cout), lambda i: (0, i, 0)),
        ],
        out_specs=pl.BlockSpec((tile, cout), lambda i: (i, 0)),
        compiler_params=pltpu.CompilerParams(
            dimension_semantics=("parallel",),
            vmem_limit_bytes=combine_vmem,
        ),
    )(coef_b, u_pad)
    return out_pad[:N]


# ----------------------------------------------------------------------------
# Glue: build dense count-adjacency from (edge_index, edge_type)
# ----------------------------------------------------------------------------
def build_adjacency(edge_index, edge_type, num_nodes, num_rel):
    src = edge_index[0]
    dst = edge_index[1]
    adj = jnp.zeros((num_rel, num_nodes, num_nodes), jnp.float32)
    adj = adj.at[edge_type, dst, src].add(1.0)
    return adj


# ----------------------------------------------------------------------------
# Pure numpy reference (mirrors the PyTorch / PyG forward exactly, eval mode)
# ----------------------------------------------------------------------------
def reference_forward(x, edge_index, edge_type, params):
    x = np.asarray(x, np.float64)
    edge_index = np.asarray(edge_index)
    edge_type = np.asarray(edge_type)
    N = x.shape[0]
    R, Cout, _ = params["wq"].shape
    us = []
    for r in range(R):
        sel = edge_type == r
        src = edge_index[0, sel]
        dst = edge_index[1, sel]
        wq = np.asarray(params["wq"][r], np.float64); bq = np.asarray(params["bq"][r, 0], np.float64)
        wk = np.asarray(params["wk"][r], np.float64); bk = np.asarray(params["bk"][r, 0], np.float64)
        wv = np.asarray(params["wv"][r], np.float64); bv = np.asarray(params["bv"][r, 0], np.float64)
        ws = np.asarray(params["ws"][r], np.float64); bs = np.asarray(params["bs"][r, 0], np.float64)
        q = x @ wq.T + bq
        k = x @ wk.T + bk
        v = x @ wv.T + bv
        s = (q[dst] * k[src]).sum(-1) / math.sqrt(Cout)          # per-edge score
        mval = np.full(N, -np.inf)
        np.maximum.at(mval, dst, s)
        num = np.exp(s - mval[dst])
        den = np.zeros(N)
        np.add.at(den, dst, num)
        agg = np.zeros((N, Cout))
        np.add.at(agg, dst, num[:, None] * v[src])
        att = np.where(den[:, None] > 0, agg / np.maximum(den[:, None], 1e-16), 0.0)
        us.append(att + x @ ws.T + bs)
    u = np.stack(us, axis=1)                                     # (N, R, Cout) torch layout
    t = u.mean(0)                                                # (R, Cout)
    w = t @ np.asarray(params["wa"], np.float64).T               # (R, H)
    a = float(np.asarray(params["prelu_a"])[0])
    w = np.where(w > 0, w, a * w)
    e = np.exp(w - w.max(axis=0, keepdims=True))
    beta = e / e.sum(axis=0, keepdims=True)
    coef = beta.mean(axis=1)                                     # (R,)
    return (u * coef[None, :, None]).sum(1)                      # (N, Cout)


# ----------------------------------------------------------------------------
if __name__ == "__main__":
    N = 16          # nodes
    C_IN = 8        # in_channels
    C_OUT = 32      # out_channels (trans_heads=1 -> per-head dim == C_OUT)
    R = 2           # num_edge_type
    H = 4           # semantic_head
    E = 48          # number of edges

    key = jax.random.PRNGKey(0)
    keys = jax.random.split(key, 16)

    x = jax.random.normal(keys[0], (N, C_IN), jnp.float32)
    src = jax.random.randint(keys[1], (E,), 0, N)
    dst = jax.random.randint(keys[2], (E,), 0, N)
    edge_index = jnp.stack([src, dst], axis=0)                   # (2, E)
    edge_type = jax.random.randint(keys[3], (E,), 0, R)          # (E,)

    def init_w(k, shape):
        return 0.1 * jax.random.normal(k, shape, jnp.float32)

    params = {
        "wq": init_w(keys[4], (R, C_OUT, C_IN)),
        "bq": init_w(keys[5], (R, 1, C_OUT)),
        "wk": init_w(keys[6], (R, C_OUT, C_IN)),
        "bk": init_w(keys[7], (R, 1, C_OUT)),
        "wv": init_w(keys[8], (R, C_OUT, C_IN)),
        "bv": init_w(keys[9], (R, 1, C_OUT)),
        "ws": init_w(keys[10], (R, C_OUT, C_IN)),
        "bs": init_w(keys[11], (R, 1, C_OUT)),
        "wa": init_w(keys[12], (H, C_OUT)),
        "prelu_a": jnp.array([0.25], jnp.float32),               # torch PReLU default
    }

    # --- small case (single tile) ---
    adj = build_adjacency(edge_index, edge_type, N, R)
    out = jax.block_until_ready(rgt_layer_forward(x, adj, params))
    ref = reference_forward(x, edge_index, edge_type, params)
    if not np.allclose(np.asarray(out), ref, rtol=5e-2, atol=5e-2):
        raise AssertionError(
            "small-case mismatch vs reference: max abs diff = %g"
            % float(np.max(np.abs(np.asarray(out) - ref))))

    # --- second check: exercises the tiled flash path (padding + online softmax across j tiles) ---
    N2, E2 = 300, 900
    k2 = jax.random.split(jax.random.PRNGKey(1), 4)
    x2 = jax.random.normal(k2[0], (N2, C_IN), jnp.float32)
    src2 = jax.random.randint(k2[1], (E2,), 0, N2)
    dst2 = jax.random.randint(k2[2], (E2,), 0, N2)
    ei2 = jnp.stack([src2, dst2], axis=0)
    et2 = jax.random.randint(k2[3], (E2,), 0, R)
    adj2 = build_adjacency(ei2, et2, N2, R)
    out2 = jax.block_until_ready(rgt_layer_forward(x2, adj2, params, max_tile=128))
    ref2 = reference_forward(x2, ei2, et2, params)
    if not np.allclose(np.asarray(out2), ref2, rtol=5e-2, atol=5e-2):
        raise AssertionError(
            "tiled-case mismatch vs reference: max abs diff = %g"
            % float(np.max(np.abs(np.asarray(out2) - ref2))))

    print("KERNEL_OK")
</pallas_src>

<mosaic_0001>
module attributes {stable_mosaic.version = 11 : i64} {
  func.func @_flash_conv_kernel(%arg0: i32, %arg1: i32, %arg2: i32, %arg3: memref<16x8xf32, #tpu.memory_space<vmem>>, %arg4: memref<16x8xf32, #tpu.memory_space<vmem>>, %arg5: memref<1x16x16xbf16, #tpu.memory_space<vmem>>, %arg6: memref<1x8x64xf32, #tpu.memory_space<vmem>>, %arg7: memref<1x1x64xf32, #tpu.memory_space<vmem>>, %arg8: memref<1x8x64xf32, #tpu.memory_space<vmem>>, %arg9: memref<1x1x64xf32, #tpu.memory_space<vmem>>, %arg10: memref<1x16x32xf32, #tpu.memory_space<vmem>>, %arg11: memref<16x1xf32, #tpu.memory_space<vmem>>, %arg12: memref<16x1xf32, #tpu.memory_space<vmem>>, %arg13: memref<16x32xf32, #tpu.memory_space<vmem>>) attributes {dimension_semantics = [#tpu.dimension_semantics<parallel>, #tpu.dimension_semantics<parallel>, #tpu.dimension_semantics<arbitrary>], iteration_bounds = array<i64: 2, 1, 1>, scalar_prefetch = 0 : i64, scratch_operands = 3 : i64, tpu.core_type = #tpu.core_type<tc>, window_params = [{transform_indices = @transform_0, window_bounds = array<i64: 16, 8>}, {transform_indices = @transform_1, window_bounds = array<i64: 16, 8>}, {transform_indices = @transform_2, window_bounds = array<i64: 1, 16, 16>}, {transform_indices = @transform_3, window_bounds = array<i64: 1, 8, 64>}, {transform_indices = @transform_4, window_bounds = array<i64: 1, 1, 64>}, {transform_indices = @transform_5, window_bounds = array<i64: 1, 8, 64>}, {transform_indices = @transform_6, window_bounds = array<i64: 1, 1, 64>}, {transform_indices = @transform_7, window_bounds = array<i64: 1, 16, 32>}]} {
    %c0_i32 = arith.constant 0 : i32
    %0 = arith.cmpi eq, %arg2, %c0_i32 : i32
    %1 = arith.extui %0 : i1 to i32
    %c0_i32_0 = arith.constant 0 : i32
    %2 = arith.cmpi ne, %1, %c0_i32_0 : i32
    scf.if %2 {
      %cst_38 = arith.constant -1.000000e+30 : f32
      %56 = vector.broadcast %cst_38 : f32 to vector<16x1xf32>
      %c0_39 = arith.constant 0 : index
      %c0_40 = arith.constant 0 : index
      %57 = vector.load %arg11[%c0_39, %c0_40] : memref<16x1xf32, #tpu.memory_space<vmem>>, vector<16x1xf32>
      tpu.vector_store %arg11[%c0_39, %c0_40], %56 {strides = array<i32>} : memref<16x1xf32, #tpu.memory_space<vmem>>, vector<16x1xf32>,
      %cst_41 = arith.constant 0.000000e+00 : f32
      %58 = vector.broadcast %cst_41 : f32 to vector<16x1xf32>
      %c0_42 = arith.constant 0 : index
      %c0_43 = arith.constant 0 : index
      %59 = vector.load %arg12[%c0_42, %c0_43] : memref<16x1xf32, #tpu.memory_space<vmem>>, vector<16x1xf32>
      tpu.vector_store %arg12[%c0_42, %c0_43], %58 {strides = array<i32>} : memref<16x1xf32, #tpu.memory_space<vmem>>, vector<16x1xf32>,
      %cst_44 = arith.constant 0.000000e+00 : f32
      %60 = vector.broadcast %cst_44 : f32 to vector<16x32xf32>
      %c0_45 = arith.constant 0 : index
      %c0_46 = arith.constant 0 : index
      %61 = vector.load %arg13[%c0_45, %c0_46] : memref<16x32xf32, #tpu.memory_space<vmem>>, vector<16x32xf32>
      tpu.vector_store %arg13[%c0_45, %c0_46], %60 {strides = array<i32>} : memref<16x32xf32, #tpu.memory_space<vmem>>, vector<16x32xf32>,
    } else {
    }
    %c0 = arith.constant 0 : index
    %c0_1 = arith.constant 0 : index
    %3 = vector.load %arg3[%c0, %c0_1] : memref<16x8xf32, #tpu.memory_space<vmem>>, vector<16x8xf32>
    %c0_2 = arith.constant 0 : index
    %c0_3 = arith.constant 0 : index
    %c0_4 = arith.constant 0 : index
    %4 = vector.load %arg6[%c0_2, %c0_3, %c0_4] : memref<1x8x64xf32, #tpu.memory_space<vmem>>, vector<1x8x64xf32>
    %5 = vector.shape_cast %4 : vector<1x8x64xf32> to vector<8x64xf32>
    %cst = arith.constant dense<0.000000e+00> : vector<16x64xf32>
    %6 = tpu.matmul %3, %5, %cst {dimension_numbers = #tpu.dot_dimension_numbers<[1], [0], [0], [1], [0, 0, 1, 1], [], []>} : vector<16x8xf32>, vector<8x64xf32>, vector<16x64xf32> -> vector<16x64xf32>
    %c0_5 = arith.constant 0 : index
    %c0_6 = arith.constant 0 : index
    %c0_7 = arith.constant 0 : index
    %7 = vector.load %arg7[%c0_5, %c0_6, %c0_7] : memref<1x1x64xf32, #tpu.memory_space<vmem>>, vector<1x1x64xf32>
    %8 = vector.shape_cast %7 : vector<1x1x64xf32> to vector<1x64xf32>
    %9 = vector.broadcast %8 : vector<1x64xf32> to vector<16x64xf32>
    %10 = arith.addf %6, %9 : vector<16x64xf32>
    %11 = vector.extract_strided_slice %10 {offsets = [0, 0], sizes = [16, 32], strides = [1, 1]} : vector<16x64xf32> to vector<16x32xf32>
    %c0_8 = arith.constant 0 : index
    %c0_9 = arith.constant 0 : index
    %12 = vector.load %arg4[%c0_8, %c0_9] : memref<16x8xf32, #tpu.memory_space<vmem>>, vector<16x8xf32>
    %c0_10 = arith.constant 0 : index
    %c0_11 = arith.constant 0 : index
    %c0_12 = arith.constant 0 : index
    %13 = vector.load %arg8[%c0_10, %c0_11, %c0_12] : memref<1x8x64xf32, #tpu.memory_space<vmem>>, vector<1x8x64xf32>
    %14 = vector.shape_cast %13 : vector<1x8x64xf32> to vector<8x64xf32>
    %cst_13 = arith.constant dense<0.000000e+00> : vector<16x64xf32>
    %15 = tpu.matmul %12, %14, %cst_13 {dimension_numbers = #tpu.dot_dimension_numbers<[1], [0], [0], [1], [0, 0, 1, 1], [], []>} : vector<16x8xf32>, vector<8x64xf32>, vector<16x64xf32> -> vector<16x64xf32>
    %c0_14 = arith.constant 0 : index
    %c0_15 = arith.constant 0 : index
    %c0_16 = arith.constant 0 : index
    %16 = vector.load %arg9[%c0_14, %c0_15, %c0_16] : memref<1x1x64xf32, #tpu.memory_space<vmem>>, vector<1x1x64xf32>
    %17 = vector.shape_cast %16 : vector<1x1x64xf32> to vector<1x64xf32>
    %18 = vector.broadcast %17 : vector<1x64xf32> to vector<16x64xf32>
    %19 = arith.addf %15, %18 : vector<16x64xf32>
    %20 = vector.extract_strided_slice %19 {offsets = [0, 0], sizes = [16, 32], strides = [1, 1]} : vector<16x64xf32> to vector<16x32xf32>
    %21 = vector.extract_strided_slice %19 {offsets = [0, 32], sizes = [16, 32], strides = [1, 1]} : vector<16x64xf32> to vector<16x32xf32>
    %22 = arith.truncf %11 : vector<16x32xf32> to vector<16x32xbf16>
    %23 = arith.truncf %20 : vector<16x32xf32> to vector<16x32xbf16>
    %cst_17 = arith.constant dense<0.000000e+00> : vector<16x16xf32>
    %24 = tpu.matmul %22, %23, %cst_17 {dimension_numbers = #tpu.dot_dimension_numbers<[1], [1], [0], [0], [0, 0, 1, 0], [], []>} : vector<16x32xbf16>, vector<16x32xbf16>, vector<16x16xf32> -> vector<16x16xf32>
    %c0_18 = arith.constant 0 : index
    %c0_19 = arith.constant 0 : index
    %c0_20 = arith.constant 0 : index
    %25 = vector.load %arg5[%c0_18, %c0_19, %c0_20] : memref<1x16x16xbf16, #tpu.memory_space<vmem>>, vector<1x16x16xbf16>
    %26 = vector.shape_cast %25 : vector<1x16x16xbf16> to vector<16x16xbf16>
    %27 = arith.extf %26 : vector<16x16xbf16> to vector<16x16xf32>
    %c0_21 = arith.constant 0 : index
    %c0_22 = arith.constant 0 : index
    %28 = vector.load %arg11[%c0_21, %c0_22] : memref<16x1xf32, #tpu.memory_space<vmem>>, vector<16x1xf32>
    %cst_23 = arith.constant dense<0xFF800000> : vector<16xf32>
    %29 = vector.multi_reduction <maximumf>, %24, %cst_23 [1] : vector<16x16xf32> to vector<16xf32>
    %30 = vector.shape_cast %29 : vector<16xf32> to vector<16x1xf32>
    %31 = arith.maximumf %28, %30 : vector<16x1xf32>
    %32 = arith.subf %28, %31 : vector<16x1xf32>
    %33 = math.exp %32 : vector<16x1xf32>
    %34 = vector.broadcast %31 : vector<16x1xf32> to vector<16x16xf32>
    %35 = arith.subf %24, %34 : vector<16x16xf32>
    %36 = math.exp %35 : vector<16x16xf32>
    %37 = arith.mulf %36, %27 : vector<16x16xf32>
    %c0_24 = arith.constant 0 : index
    %c0_25 = arith.constant 0 : index
    %38 = vector.load %arg12[%c0_24, %c0_25] : memref<16x1xf32, #tpu.memory_space<vmem>>, vector<16x1xf32>
    %39 = arith.mulf %33, %38 : vector<16x1xf32>
    %cst_26 = arith.constant dense<0.000000e+00> : vector<16xf32>
    %40 = vector.multi_reduction <add>, %37, %cst_26 [1] : vector<16x16xf32> to vector<16xf32>
    %41 = vector.shape_cast %40 : vector<16xf32> to vector<16x1xf32>
    %42 = arith.addf %39, %41 : vector<16x1xf32>
    %c0_27 = arith.constant 0 : index
    %c0_28 = arith.constant 0 : index
    %43 = vector.load %arg12[%c0_27, %c0_28] : memref<16x1xf32, #tpu.memory_space<vmem>>, vector<16x1xf32>
    tpu.vector_store %arg12[%c0_27, %c0_28], %42 {strides = array<i32>} : memref<16x1xf32, #tpu.memory_space<vmem>>, vector<16x1xf32>,
    %c0_29 = arith.constant 0 : index
    %c0_30 = arith.constant 0 : index
    %44 = vector.load %arg13[%c0_29, %c0_30] : memref<16x32xf32, #tpu.memory_space<vmem>>, vector<16x32xf32>
    %45 = vector.broadcast %33 : vector<16x1xf32> to vector<16x32xf32>
    %46 = arith.mulf %45, %44 : vector<16x32xf32>
    %47 = arith.truncf %37 : vector<16x16xf32> to vector<16x16xbf16>
    %48 = arith.truncf %21 : vector<16x32xf32> to vector<16x32xbf16>
    %cst_31 = arith.constant dense<0.000000e+00> : vector<16x32xf32>
    %49 = tpu.matmul %47, %48, %cst_31 {dimension_numbers = #tpu.dot_dimension_numbers<[1], [0], [0], [1], [0, 0, 1, 1], [], []>} : vector<16x16xbf16>, vector<16x32xbf16>, vector<16x32xf32> -> vector<16x32xf32>
    %50 = arith.addf %46, %49 : vector<16x32xf32>
    %c0_32 = arith.constant 0 : index
    %c0_33 = arith.constant 0 : index
    %51 = vector.load %arg13[%c0_32, %c0_33] : memref<16x32xf32, #tpu.memory_space<vmem>>, vector<16x32xf32>
    tpu.vector_store %arg13[%c0_32, %c0_33], %50 {strides = array<i32>} : memref<16x32xf32, #tpu.memory_space<vmem>>, vector<16x32xf32>,
    %c0_34 = arith.constant 0 : index
    %c0_35 = arith.constant 0 : index
    %52 = vector.load %arg11[%c0_34, %c0_35] : memref<16x1xf32, #tpu.memory_space<vmem>>, vector<16x1xf32>
    tpu.vector_store %arg11[%c0_34, %c0_35], %31 {strides = array<i32>} : memref<16x1xf32, #tpu.memory_space<vmem>>, vector<16x1xf32>,
    %c0_i32_36 = arith.constant 0 : i32
    %53 = arith.cmpi eq, %arg2, %c0_i32_36 : i32
    %54 = arith.extui %53 : i1 to i32
    %c0_i32_37 = arith.constant 0 : i32
    %55 = arith.cmpi ne, %54, %c0_i32_37 : i32
    scf.if %55 {
      %56 = vector.extract_strided_slice %10 {offsets = [0, 32], sizes = [16, 32], strides = [1, 1]} : vector<16x64xf32> to vector<16x32xf32>
      %c0_38 = arith.constant 0 : index
      %c0_39 = arith.constant 0 : index
      %57 = vector.load %arg12[%c0_38, %c0_39] : memref<16x1xf32, #tpu.memory_space<vmem>>, vector<16x1xf32>
      %cst_40 = arith.constant 1.000000e-16 : f32
      %58 = vector.broadcast %cst_40 : f32 to vector<16x1xf32>
      %59 = arith.maximumf %57, %58 : vector<16x1xf32>
      %60 = tpu.reciprocal %59 {approx = true} : vector<16x1xf32> -> vector<16x1xf32>
      %c0_41 = arith.constant 0 : index
      %c0_42 = arith.constant 0 : index
      %61 = vector.load %arg13[%c0_41, %c0_42] : memref<16x32xf32, #tpu.memory_space<vmem>>, vector<16x32xf32>
      %62 = vector.broadcast %60 : vector<16x1xf32> to vector<16x32xf32>
      %63 = arith.mulf %61, %62 : vector<16x32xf32>
      %64 = arith.addf %63, %56 : vector<16x32xf32>
      %c0_43 = arith.constant 0 : index
      %c0_44 = arith.constant 0 : index
      %c0_45 = arith.constant 0 : index
      %65 = vector.load %arg10[%c0_43, %c0_44, %c0_45] : memref<1x16x32xf32, #tpu.memory_space<vmem>>, vector<1x16x32xf32>
      %66 = vector.shape_cast %65 : vector<1x16x32xf32> to vector<16x32xf32>
      %67 = vector.shape_cast %64 : vector<16x32xf32> to vector<1x16x32xf32>
      tpu.vector_store %arg10[%c0_43, %c0_44, %c0_45], %67 {strides = array<i32>} : memref<1x16x32xf32, #tpu.memory_space<vmem>>, vector<1x16x32xf32>,
    } else {
    }
    return
  }
  func.func @transform_0(%arg0: i32, %arg1: i32, %arg2: i32) -> (i32, i32) {
    %c0_i32 = arith.constant 0 : i32
    %c0_i32_0 = arith.constant 0 : i32
    return %arg1, %c0_i32 : i32, i32
  }
  func.func @transform_1(%arg0: i32, %arg1: i32, %arg2: i32) -> (i32, i32) {
    %c0_i32 = arith.constant 0 : i32
    %c0_i32_0 = arith.constant 0 : i32
    return %arg2, %c0_i32 : i32, i32
  }
  func.func @transform_2(%arg0: i32, %arg1: i32, %arg2: i32) -> (i32, i32, i32) {
    %c0_i32 = arith.constant 0 : i32
    return %arg0, %arg1, %arg2 : i32, i32, i32
  }
  func.func @transform_3(%arg0: i32, %arg1: i32, %arg2: i32) -> (i32, i32, i32) {
    %c0_i32 = arith.constant 0 : i32
    %c0_i32_0 = arith.constant 0 : i32
    %c0_i32_1 = arith.constant 0 : i32
    return %arg0, %c0_i32, %c0_i32_0 : i32, i32, i32
  }
  func.func @transform_4(%arg0: i32, %arg1: i32, %arg2: i32) -> (i32, i32, i32) {
    %c0_i32 = arith.constant 0 : i32
    %c0_i32_0 = arith.constant 0 : i32
    %c0_i32_1 = arith.constant 0 : i32
    return %arg0, %c0_i32, %c0_i32_0 : i32, i32, i32
  }
  func.func @transform_5(%arg0: i32, %arg1: i32, %arg2: i32) -> (i32, i32, i32) {
    %c0_i32 = arith.constant 0 : i32
    %c0_i32_0 = arith.constant 0 : i32
    %c0_i32_1 = arith.constant 0 : i32
    return %arg0, %c0_i32, %c0_i32_0 : i32, i32, i32
  }
  func.func @transform_6(%arg0: i32, %arg1: i32, %arg2: i32) -> (i32, i32, i32) {
    %c0_i32 = arith.constant 0 : i32
    %c0_i32_0 = arith.constant 0 : i32
    %c0_i32_1 = arith.constant 0 : i32
    return %arg0, %c0_i32, %c0_i32_0 : i32, i32, i32
  }
  func.func @transform_7(%arg0: i32, %arg1: i32, %arg2: i32) -> (i32, i32, i32) {
    %c0_i32 = arith.constant 0 : i32
    %c0_i32_0 = arith.constant 0 : i32
    return %arg0, %arg1, %c0_i32 : i32, i32, i32
  }
}

</mosaic_0001>

<llo_original>
// kernel: tpu_custom_call.1
$region0: #{tpu_custom_call.1}
  #allocation0 [shape = 'u32[]', space=smem, size = 0x4, offset = 0x4, fixed_abs, tag = 'smem constant byte address 0x4 - core index']
  #allocation1 [shape = 'u32[144,128]{1,0:T(1,128)}', space=vmem, size = 0x12000, scoped, tag = 'internal scratch']
  #allocation2 [shape = 'f32[16,1]{1,0:T(8,128)}', space=vmem, size = 0x2000, scoped, tag = 'scratch operand']
  #allocation3 [shape = 'f32[16,1]{1,0:T(8,128)}', space=vmem, size = 0x2000, scoped, tag = 'scratch operand']
  #allocation4 [shape = 'f32[16,32]{1,0:T(8,128)}', space=vmem, size = 0x2000, scoped, tag = 'scratch operand']
  %s0 = inlined_call_operand.vmem [shape: f32[16,8], index: 0, kind: input, shape index: {}]
  %s1 = inlined_call_operand.vmem [shape: f32[16,8], index: 1, kind: input, shape index: {}]
  %s2 = inlined_call_operand.vmem [shape: bf16[2,16,16], index: 2, kind: input, shape index: {}]
  %s3 = inlined_call_operand.vmem [shape: f32[2,8,64], index: 3, kind: input, shape index: {}]
  %s4 = inlined_call_operand.vmem [shape: f32[2,1,64], index: 4, kind: input, shape index: {}]
  %s5 = inlined_call_operand.vmem [shape: f32[2,8,64], index: 5, kind: input, shape index: {}]
  %s6 = inlined_call_operand.vmem [shape: f32[2,1,64], index: 6, kind: input, shape index: {}]
  %s7 = inlined_call_operand.hbm [shape: f32[2,16,32], index: 7, kind: output, shape index: {}]
  %s8 = sld [smem:[#allocation0]]
  $region69: #{tpu_custom_call.1} parent=0
    _
  %s10 = ssub.s32 1, %s8
  %s11 = scalar_select 0, %s10, %s8
  $region1: #{tpu_custom_call.1} parent=0
    #allocation5 [shape = 'u8[16384]{0}', space=vmem, size = 0x4000, scoped, tag = 'output window, operand 0']
    #allocation6 [shape = 's32[2]{0}', space=sflag, size = 0x8, scoped, tag = 'scoped memory for tpu_custom_call.1']
    %12 = vsyncpa [#allocation6], 0
    %s13 = scalar_lea.sflag [#allocation6], 1
    %14 = vsyncpa %s13, 0
    loop: start=0, step=1, limit=4
    $region2: #{tpu_custom_call.1} parent=1 // loop_pre_header
      _
    $region3: #{tpu_custom_call.1} parent=1 // loop_header
      %s16 = sphi 0, %s20
      %p17 = scmp.ge.s32.totalorder %s16, 4
      %s23 = sphi 0, %s42
      %s24 = sphi 0, %s38
      %s25 = sphi 0, %s34
      %s26 = sphi 0, %s23
      %s27 = sphi 0, %s24
      %s28 = sphi 0, %s25
      %s29 = sphi 0, %s26
      %s30 = sphi 0, %s27
      %s31 = sphi 0, %s28
      %s45 = sphi 0, %s47
      %s48 = sphi 0, %s45
      %s49 = sphi 0, %s48
      %s65 = sphi 0, %s49
      %s71 = sphi 0, %s73
      %s74 = sphi 0, %s71
      %s75 = sphi 0, %s74
      %s91 = sphi 0, %s75
      %s101 = sphi 0, %s103
      %s104 = sphi 0, %s101
      %s105 = sphi 0, %s104
      %s121 = sphi 0, %s105
      %s127 = sphi 0, %s129
      %s130 = sphi 0, %s127
      %s131 = sphi 0, %s130
      %s147 = sphi 0, %s131
      %s153 = sphi 0, %s155
      %s156 = sphi 0, %s153
      %s157 = sphi 0, %s156
      %s173 = sphi 0, %s157
      %s179 = sphi 0, %s181
      %s182 = sphi 0, %s179
      %s183 = sphi 0, %s182
      %s199 = sphi 0, %s183
      %s205 = sphi 0, %s207
      %s208 = sphi 0, %s205
      %s209 = sphi 0, %s208
      %s225 = sphi 0, %s209
      %s233 = sphi 0, %s235
      %s236 = sphi 0, %s233
      %s237 = sphi 0, %s236
      %s253 = sphi 0, %s237
    $region4: #{tpu_custom_call.1} parent=1 // loop_header_branch
      %19 = sbr.rel (%p17) target = $region8
    $region5: #{tpu_custom_call.1} parent=1 // loop_body
      %s21 = ssub.s32 %s16, 1
      %s22 = ssub.s32 %s16, 2
      %s32 = sadd.s32 1, %s25
      %p33 = scmp.ge.s32.totalorder %s32, 1
      %s34 = scalar_select %p33, 0, %s32
      %s35 = sadd.s32 1, %s24
      %s36 = scalar_select %p33, %s35, %s24
      %p37 = scmp.ge.s32.totalorder %s36, 1
      %s38 = scalar_select %p37, 0, %s36
      %s39 = sadd.s32 1, %s23
      %s40 = scalar_select %p37, %s39, %s23
      %p41 = scmp.ge.s32.totalorder %s40, 2
      %s42 = scalar_select %p41, 0, %s40
      %s43 = ssub.s32 %s24, %s38
      %p44 = scmp.eq.s32.totalorder %s43, 0
      %s46 = sadd.s32 %s45, 1
      %s47 = scalar_select %p44, %s45, %s46
      %p50 = pneg %p44
      %p51 = scmp.eq.s32.totalorder %s16, 1
      %p52 = por %p50, %p51
      %p53 = scmp.ne.s32.totalorder %s45, %s48
      %p54 = scmp.eq.s32.totalorder %s16, 0
      %p55 = por %p53, %p54
      %p56 = scmp.ne.s32.totalorder %s45, %s48
      %p57 = scmp.eq.s32.totalorder %s21, 1
      %p58 = por %p56, %p57
      %p59 = scmp.ne.s32.totalorder %s48, %s49
      %p60 = scmp.eq.s32.totalorder %s21, 0
      %p61 = por %p59, %p60
      %p62 = scmp.ne.s32.totalorder %s48, %s49
      %p63 = scmp.eq.s32.totalorder %s22, 1
      %p64 = por %p62, %p63
      %p66 = scmp.ne.s32.totalorder %s49, %s65
      %p67 = scmp.eq.s32.totalorder %s22, 0
      %p68 = por %p66, %p67
      %s69 = ssub.s32 %s25, %s34
      %p70 = scmp.eq.s32.totalorder %s69, 0
      %s72 = sadd.s32 %s71, 1
      %s73 = scalar_select %p70, %s71, %s72
      %p76 = pneg %p70
      %p77 = scmp.eq.s32.totalorder %s16, 1
      %p78 = por %p76, %p77
      %p79 = scmp.ne.s32.totalorder %s71, %s74
      %p80 = scmp.eq.s32.totalorder %s16, 0
      %p81 = por %p79, %p80
      %p82 = scmp.ne.s32.totalorder %s71, %s74
      %p83 = scmp.eq.s32.totalorder %s21, 1
      %p84 = por %p82, %p83
      %p85 = scmp.ne.s32.totalorder %s74, %s75
      %p86 = scmp.eq.s32.totalorder %s21, 0
      %p87 = por %p85, %p86
      %p88 = scmp.ne.s32.totalorder %s74, %s75
      %p89 = scmp.eq.s32.totalorder %s22, 1
      %p90 = por %p88, %p89
      %p92 = scmp.ne.s32.totalorder %s75, %s91
      %p93 = scmp.eq.s32.totalorder %s22, 0
      %p94 = por %p92, %p93
      %s95 = ssub.s32 %s23, %s42
      %s96 = ssub.s32 %s24, %s38
      %s97 = sor.u32 %s95, %s96
      %s98 = ssub.s32 %s25, %s34
      %s99 = sor.u32 %s97, %s98
      %p100 = scmp.eq.s32.totalorder %s99, 0
      %s102 = sadd.s32 %s101, 1
      %s103 = scalar_select %p100, %s101, %s102
      %p106 = pneg %p100
      %p107 = scmp.eq.s32.totalorder %s16, 1
      %p108 = por %p106, %p107
      %p109 = scmp.ne.s32.totalorder %s101, %s104
      %p110 = scmp.eq.s32.totalorder %s16, 0
      %p111 = por %p109, %p110
      %p112 = scmp.ne.s32.totalorder %s101, %s104
      %p113 = scmp.eq.s32.totalorder %s21, 1
      %p114 = por %p112, %p113
      %p115 = scmp.ne.s32.totalorder %s104, %s105
      %p116 = scmp.eq.s32.totalorder %s21, 0
      %p117 = por %p115, %p116
      %p118 = scmp.ne.s32.totalorder %s104, %s105
      %p119 = scmp.eq.s32.totalorder %s22, 1
      %p120 = por %p118, %p119
      %p122 = scmp.ne.s32.totalorder %s105, %s121
      %p123 = scmp.eq.s32.totalorder %s22, 0
      %p124 = por %p122, %p123
      %s125 = ssub.s32 %s23, %s42
      %p126 = scmp.eq.s32.totalorder %s125, 0
      %s128 = sadd.s32 %s127, 1
      %s129 = scalar_select %p126, %s127, %s128
      %p132 = pneg %p126
      %p133 = scmp.eq.s32.totalorder %s16, 1
      %p134 = por %p132, %p133
      %p135 = scmp.ne.s32.totalorder %s127, %s130
      %p136 = scmp.eq.s32.totalorder %s16, 0
      %p137 = por %p135, %p136
      %p138 = scmp.ne.s32.totalorder %s127, %s130
      %p139 = scmp.eq.s32.totalorder %s21, 1
      %p140 = por %p138, %p139
      %p141 = scmp.ne.s32.totalorder %s130, %s131
      %p142 = scmp.eq.s32.totalorder %s21, 0
      %p143 = por %p141, %p142
      %p144 = scmp.ne.s32.totalorder %s130, %s131
      %p145 = scmp.eq.s32.totalorder %s22, 1
      %p146 = por %p144, %p145
      %p148 = scmp.ne.s32.totalorder %s131, %s147
      %p149 = scmp.eq.s32.totalorder %s22, 0
      %p150 = por %p148, %p149
      %s151 = ssub.s32 %s23, %s42
      %p152 = scmp.eq.s32.totalorder %s151, 0
      %s154 = sadd.s32 %s153, 1
      %s155 = scalar_select %p152, %s153, %s154
      %p158 = pneg %p152
      %p159 = scmp.eq.s32.totalorder %s16, 1
      %p160 = por %p158, %p159
      %p161 = scmp.ne.s32.totalorder %s153, %s156
      %p162 = scmp.eq.s32.totalorder %s16, 0
      %p163 = por %p161, %p162
      %p164 = scmp.ne.s32.totalorder %s153, %s156
      %p165 = scmp.eq.s32.totalorder %s21, 1
      %p166 = por %p164, %p165
      %p167 = scmp.ne.s32.totalorder %s156, %s157
      %p168 = scmp.eq.s32.totalorder %s21, 0
      %p169 = por %p167, %p168
      %p170 = scmp.ne.s32.totalorder %s156, %s157
      %p171 = scmp.eq.s32.totalorder %s22, 1
      %p172 = por %p170, %p171
      %p174 = scmp.ne.s32.totalorder %s157, %s173
      %p175 = scmp.eq.s32.totalorder %s22, 0
      %p176 = por %p174, %p175
      %s177 = ssub.s32 %s23, %s42
      %p178 = scmp.eq.s32.totalorder %s177, 0
      %s180 = sadd.s32 %s179, 1
      %s181 = scalar_select %p178, %s179, %s180
      %p184 = pneg %p178
      %p185 = scmp.eq.s32.totalorder %s16, 1
      %p186 = por %p184, %p185
      %p187 = scmp.ne.s32.totalorder %s179, %s182
      %p188 = scmp.eq.s32.totalorder %s16, 0
      %p189 = por %p187, %p188
      %p190 = scmp.ne.s32.totalorder %s179, %s182
      %p191 = scmp.eq.s32.totalorder %s21, 1
      %p192 = por %p190, %p191
      %p193 = scmp.ne.s32.totalorder %s182, %s183
      %p194 = scmp.eq.s32.totalorder %s21, 0
      %p195 = por %p193, %p194
      %p196 = scmp.ne.s32.totalorder %s182, %s183
      %p197 = scmp.eq.s32.totalorder %s22, 1
      %p198 = por %p196, %p197
      %p200 = scmp.ne.s32.totalorder %s183, %s199
      %p201 = scmp.eq.s32.totalorder %s22, 0
      %p202 = por %p200, %p201
      %s203 = ssub.s32 %s23, %s42
      %p204 = scmp.eq.s32.totalorder %s203, 0
      %s206 = sadd.s32 %s205, 1
      %s207 = scalar_select %p204, %s205, %s206
      %p210 = pneg %p204
      %p211 = scmp.eq.s32.totalorder %s16, 1
      %p212 = por %p210, %p211
      %p213 = scmp.ne.s32.totalorder %s205, %s208
      %p214 = scmp.eq.s32.totalorder %s16, 0
      %p215 = por %p213, %p214
      %p216 = scmp.ne.s32.totalorder %s205, %s208
      %p217 = scmp.eq.s32.totalorder %s21, 1
      %p218 = por %p216, %p217
      %p219 = scmp.ne.s32.totalorder %s208, %s209
      %p220 = scmp.eq.s32.totalorder %s21, 0
      %p221 = por %p219, %p220
      %p222 = scmp.ne.s32.totalorder %s208, %s209
      %p223 = scmp.eq.s32.totalorder %s22, 1
      %p224 = por %p222, %p223
      %p226 = scmp.ne.s32.totalorder %s209, %s225
      %p227 = scmp.eq.s32.totalorder %s22, 0
      %p228 = por %p226, %p227
      %s229 = ssub.s32 %s23, %s42
      %s230 = ssub.s32 %s24, %s38
      %s231 = sor.u32 %s229, %s230
      %p232 = scmp.eq.s32.totalorder %s231, 0
      %s234 = sadd.s32 %s233, 1
      %s235 = scalar_select %p232, %s233, %s234
      %p238 = pneg %p232
      %p239 = scmp.eq.s32.totalorder %s16, 1
      %p240 = por %p238, %p239
      %p241 = scmp.ne.s32.totalorder %s233, %s236
      %p242 = scmp.eq.s32.totalorder %s16, 0
      %p243 = por %p241, %p242
      %p244 = scmp.ne.s32.totalorder %s233, %s236
      %p245 = scmp.eq.s32.totalorder %s21, 1
      %p246 = por %p244, %p245
      %p247 = scmp.ne.s32.totalorder %s236, %s237
      %p248 = scmp.eq.s32.totalorder %s21, 0
      %p249 = por %p247, %p248
      %p250 = scmp.ne.s32.totalorder %s236, %s237
      %p251 = scmp.eq.s32.totalorder %s22, 1
      %p252 = por %p250, %p251
      %p254 = scmp.ne.s32.totalorder %s237, %s253
      %p255 = scmp.eq.s32.totalorder %s22, 0
      %p256 = por %p254, %p255
      %p257 = scmp.le.s32.totalorder 1, %s16
      %p258 = scmp.lt.s32.totalorder %s16, 3
      %p259 = pnand %p257, %p258
      %p260 = pneg %p259
      // Predicated region
      $region9: #{tpu_custom_call.1} parent=5 // pred_check
        _
      $region10: #{tpu_custom_call.1} parent=5 // pred_check_branch
        %262 = sbr.rel (%p259) target = $region12
      $region11: #{tpu_custom_call.1} parent=5 // pred_region
        %s263 = ssub.s32 %s16, 1
        // Predicated region
        $region13: #{tpu_custom_call.1} parent=11 // pred_check
          %p264 = pneg %p61
        $region14: #{tpu_custom_call.1} parent=11 // pred_check_branch
          %266 = sbr.rel (%p264) target = $region16
        $region15: #{tpu_custom_call.1} parent=11 // pred_region
          %s267 = smul.u32 2, %s27
          %p268 = scmp.lt.s32.totalorder %s267, 1
          %s269 = scalar_select %p268, %s267, 1
          %s270 = smul.addr %s269, 8
          %s271 = scalar_lea.vmem %s0, %s270
          %s272 = smul.u32 2, %s27
        $region16: #{tpu_custom_call.1} parent=11 // pred_fallthru
          _
        // Predicated region
        $region17: #{tpu_custom_call.1} parent=11 // pred_check
          %p273 = pneg %p87
        $region18: #{tpu_custom_call.1} parent=11 // pred_check_branch
          %275 = sbr.rel (%p273) target = $region20
        $region19: #{tpu_custom_call.1} parent=11 // pred_region
          %s276 = smul.u32 2, %s28
          %p277 = scmp.lt.s32.totalorder %s276, 1
          %s278 = scalar_select %p277, %s276, 1
          %s279 = smul.addr %s278, 8
          %s280 = scalar_lea.vmem %s1, %s279
          %s281 = smul.u32 2, %s28
        $region20: #{tpu_custom_call.1} parent=11 // pred_fallthru
          _
      $region12: #{tpu_custom_call.1} parent=5 // pred_fallthru
        _
      %p282 = scmp.lt.s32.totalorder %s16, 2
      // Predicated region
      $region21: #{tpu_custom_call.1} parent=5 // pred_check
        %p283 = pneg %p282
      $region22: #{tpu_custom_call.1} parent=5 // pred_check_branch
        %285 = sbr.rel (%p283) target = $region24
      $region23: #{tpu_custom_call.1} parent=5 // pred_region
        // Predicated region
        $region25: #{tpu_custom_call.1} parent=23 // pred_check
          %p286 = pneg %p111
        $region26: #{tpu_custom_call.1} parent=23 // pred_check_branch
          %288 = sbr.rel (%p286) target = $region28
        $region27: #{tpu_custom_call.1} parent=23 // pred_region
          %s289 = smul.u32 2, %s24
          %p290 = scmp.lt.s32.totalorder %s23, 1
          %s291 = scalar_select %p290, %s23, 1
          %p292 = scmp.lt.s32.totalorder %s289, 1
          %s293 = scalar_select %p292, %s289, 1
          %p294 = scmp.lt.s32.totalorder %s25, 0
          %s295 = scalar_select %p294, %s25, 0
          %s296 = sadd.s32 %s295, %s293
          %s297 = smul.addr %s291, 2
          %s298 = sadd.s32 %s296, %s297
          %s299 = smul.addr %s298, 4
          %s300 = scalar_lea.vmem %s2, %s299
          %s301 = smul.u32 2, %s24
        $region28: #{tpu_custom_call.1} parent=23 // pred_fallthru
          _
        // Predicated region
        $region29: #{tpu_custom_call.1} parent=23 // pred_check
          %p302 = pneg %p137
        $region30: #{tpu_custom_call.1} parent=23 // pred_check_branch
          %304 = sbr.rel (%p302) target = $region32
        $region31: #{tpu_custom_call.1} parent=23 // pred_region
          %p305 = scmp.lt.s32.totalorder %s23, 1
          %s306 = scalar_select %p305, %s23, 1
          %s307 = smul.addr %s306, 8
          %s308 = scalar_lea.vmem %s3, %s307
        $region32: #{tpu_custom_call.1} parent=23 // pred_fallthru
          _
        // Predicated region
        $region33: #{tpu_custom_call.1} parent=23 // pred_check
          %p309 = pneg %p163
        $region34: #{tpu_custom_call.1} parent=23 // pred_check_branch
          %311 = sbr.rel (%p309) target = $region36
        $region35: #{tpu_custom_call.1} parent=23 // pred_region
          %p312 = scmp.lt.s32.totalorder %s23, 1
          %s313 = scalar_select %p312, %s23, 1
          %s314 = scalar_lea.vmem %s4, %s313
        $region36: #{tpu_custom_call.1} parent=23 // pred_fallthru
          _
        // Predicated region
        $region37: #{tpu_custom_call.1} parent=23 // pred_check
          %p315 = pneg %p189
        $region38: #{tpu_custom_call.1} parent=23 // pred_check_branch
          %317 = sbr.rel (%p315) target = $region40
        $region39: #{tpu_custom_call.1} parent=23 // pred_region
          %p318 = scmp.lt.s32.totalorder %s23, 1
          %s319 = scalar_select %p318, %s23, 1
          %s320 = smul.addr %s319, 8
          %s321 = scalar_lea.vmem %s5, %s320
        $region40: #{tpu_custom_call.1} parent=23 // pred_fallthru
          _
        // Predicated region
        $region41: #{tpu_custom_call.1} parent=23 // pred_check
          %p322 = pneg %p215
        $region42: #{tpu_custom_call.1} parent=23 // pred_check_branch
          %324 = sbr.rel (%p322) target = $region44
        $region43: #{tpu_custom_call.1} parent=23 // pred_region
          %p325 = scmp.lt.s32.totalorder %s23, 1
          %s326 = scalar_select %p325, %s23, 1
          %s327 = scalar_lea.vmem %s6, %s326
        $region44: #{tpu_custom_call.1} parent=23 // pred_fallthru
          _
      $region24: #{tpu_custom_call.1} parent=5 // pred_fallthru
        _
      %p328 = scmp.le.s32.totalorder 1, %s16
      %p329 = scmp.lt.s32.totalorder %s16, 3
      %p330 = pnand %p328, %p329
      %p331 = pneg %p330
      // Predicated region
      $region45: #{tpu_custom_call.1} parent=5 // pred_check
        _
      $region46: #{tpu_custom_call.1} parent=5 // pred_check_branch
        %333 = sbr.rel (%p330) target = $region48
      $region47: #{tpu_custom_call.1} parent=5 // pred_region
        %s334 = ssub.s32 %s16, 1
        %s335 = smul.u32 2, %s27
        %p336 = scmp.lt.s32.totalorder %s335, 1
        %s337 = scalar_select %p336, %s335, 1
        %s338 = smul.addr %s337, 8
        %s339 = scalar_lea.vmem %s0, %s338
        %p340 = pneg %p61
        %p341 = pneg %p58
        %s342 = smul.u32 2, %s28
        %p343 = scmp.lt.s32.totalorder %s342, 1
        %s344 = scalar_select %p343, %s342, 1
        %s345 = smul.addr %s344, 8
        %s346 = scalar_lea.vmem %s1, %s345
        %p347 = pneg %p87
        %p348 = pneg %p84
        %s349 = smul.u32 2, %s27
        %p350 = scmp.lt.s32.totalorder %s26, 1
        %s351 = scalar_select %p350, %s26, 1
        %p352 = scmp.lt.s32.totalorder %s349, 1
        %s353 = scalar_select %p352, %s349, 1
        %p354 = scmp.lt.s32.totalorder %s28, 0
        %s355 = scalar_select %p354, %s28, 0
        %s356 = sadd.s32 %s355, %s353
        %s357 = smul.addr %s351, 2
        %s358 = sadd.s32 %s356, %s357
        %s359 = smul.addr %s358, 4
        %s360 = scalar_lea.vmem %s2, %s359
        %p361 = pneg %p117
        %p362 = pneg %p114
        %p363 = scmp.lt.s32.totalorder %s26, 1
        %s364 = scalar_select %p363, %s26, 1
        %s365 = smul.addr %s364, 8
        %s366 = scalar_lea.vmem %s3, %s365
        %p367 = pneg %p143
        %p368 = pneg %p140
        %p369 = scmp.lt.s32.totalorder %s26, 1
        %s370 = scalar_select %p369, %s26, 1
        %s371 = scalar_lea.vmem %s4, %s370
        %p372 = pneg %p169
        %p373 = pneg %p166
        %p374 = scmp.lt.s32.totalorder %s26, 1
        %s375 = scalar_select %p374, %s26, 1
        %s376 = smul.addr %s375, 8
        %s377 = scalar_lea.vmem %s5, %s376
        %p378 = pneg %p195
        %p379 = pneg %p192
        %p380 = scmp.lt.s32.totalorder %s26, 1
        %s381 = scalar_select %p380, %s26, 1
        %s382 = scalar_lea.vmem %s6, %s381
        %p383 = pneg %p221
        %p384 = pneg %p218
        %p385 = pneg %p249
        %p386 = pneg %p246
        %s387 = sand.u32 %s236, 1
        %s388 = scalar_lea.sflag [#allocation6], %s387
        %s389 = sand.u32 %s236, 1
        %s390 = smul.addr %s389, 16
        %s391 = scalar_lea.vmem [#allocation5], %s390
        %s392 = smul.u32 2, %s27
        %p393 = scmp.lt.s32.totalorder %s392, 1
        %s394 = scalar_select %p393, %s392, 1
        %s395 = smul.addr %s394, 8
        %s396 = scalar_lea.vmem %s0, %s395
        %s397 = smul.u32 2, %s27
        %s398 = smul.u32 2, %s28
        %p399 = scmp.lt.s32.totalorder %s398, 1
        %s400 = scalar_select %p399, %s398, 1
        %s401 = smul.addr %s400, 8
        %s402 = scalar_lea.vmem %s1, %s401
        %s403 = smul.u32 2, %s28
        %s404 = smul.u32 2, %s27
        %p405 = scmp.lt.s32.totalorder %s26, 1
        %s406 = scalar_select %p405, %s26, 1
        %p407 = scmp.lt.s32.totalorder %s404, 1
        %s408 = scalar_select %p407, %s404, 1
        %p409 = scmp.lt.s32.totalorder %s28, 0
        %s410 = scalar_select %p409, %s28, 0
        %s411 = sadd.s32 %s410, %s408
        %s412 = smul.addr %s406, 2
        %s413 = sadd.s32 %s411, %s412
        %s414 = smul.addr %s413, 4
        %s415 = scalar_lea.vmem %s2, %s414
        %s416 = smul.u32 2, %s27
        %p417 = scmp.lt.s32.totalorder %s26, 1
        %s418 = scalar_select %p417, %s26, 1
        %s419 = smul.addr %s418, 8
        %s420 = scalar_lea.vmem %s3, %s419
        %p421 = scmp.lt.s32.totalorder %s26, 1
        %s422 = scalar_select %p421, %s26, 1
        %s423 = scalar_lea.vmem %s4, %s422
        %p424 = scmp.lt.s32.totalorder %s26, 1
        %s425 = scalar_select %p424, %s26, 1
        %s426 = smul.addr %s425, 8
        %s427 = scalar_lea.vmem %s5, %s426
        %p428 = scmp.lt.s32.totalorder %s26, 1
        %s429 = scalar_select %p428, %s26, 1
        %s430 = scalar_lea.vmem %s6, %s429
        %s431 = smul.u32 2, %s27
        %p433 = scmp.eq.s32.totalorder %s28, 0
        // Predicated region
        $region49: #{tpu_custom_call.1} parent=47 // pred_check
          %p434 = pneg %p433
        $region50: #{tpu_custom_call.1} parent=47 // pred_check_branch
          %436 = sbr.rel (%p434) target = $region52
        $region51: #{tpu_custom_call.1} parent=47 // pred_region
          %vm437 = vcmask 7168
          %438 = vst.msk [vmem:[#allocation2] sm:$0xff] %vm437, -1e+30
          %439 = vst.msk [vmem:[#allocation2 + $0x8] sm:$0xff] %vm437, -1e+30
          %440 = vst.msk [vmem:[#allocation3] sm:$0xff] %vm437, 0.0
          %441 = vst.msk [vmem:[#allocation3 + $0x8] sm:$0xff] %vm437, 0.0
          %vm442 = vcmask 261120
          %443 = vst.msk [vmem:[#allocation4] sm:$0xff] %vm442, 0.0
          %444 = vst.msk [vmem:[#allocation4 + $0x8] sm:$0xff] %vm442, 0.0
        $region52: #{tpu_custom_call.1} parent=47 // pred_fallthru
          _
        %v445 = vld [vmem:[%s396] sm:$0xff]
        %v446 = vld [vmem:[%s396 + $0x8] sm:$0xff]
        %v447 = vld [vmem:[%s420] sm:$0xff]
        %v448 = vld [vmem:[%s423] sm:$0x1]
        %v450 = vlaneseq
        %v451 = vshrl.u32 %v450, 7
        %v452 = vsub.s32 0, %v451
        %v453 = vrot.slane %v448, %v452
        %vm455 = vcmask 64512
        %v457 = vsel %vm455, %v445, 0
        %v460 = vsel %vm455, %v446, 0
        %462 = vmatprep.subr.mxu0 0.0
        %463 = vmatpush1.msra.mxu0 0.0
        %464 = vmatprep.subr.mxu0 0.0
        %465 = vmatpush1.msra.mxu0 0.0
        %466 = vmatprep.subr.mxu0 0.0
        %467 = vmatpush1.msra.mxu0 0.0
        %468 = vmatprep.subr.mxu0 0.0
        %469 = vmatpush1.msra.mxu0 0.0
        %470 = vmatprep.subr.mxu0 0.0
        %471 = vmatpush1.msra.mxu0 0.0
        %472 = vmatprep.subr.mxu0 0.0
        %473 = vmatpush1.msra.mxu0 0.0
        %474 = vmatprep.subr.mxu0 0.0
        %475 = vmatpush1.msra.mxu0 0.0
        %476 = vmatprep.subr.mxu0 0.0
        %477 = vmatpush1.msra.mxu0 0.0
        %478 = vmatprep.subr.mxu0 0.0
        %479 = vmatpush1.msra.mxu0 0.0
        %480 = vmatprep.subr.mxu0 0.0
        %481 = vmatpush1.msra.mxu0 0.0
        %482 = vmatprep.subr.mxu0 0.0
        %483 = vmatpush1.msra.mxu0 0.0
        %484 = vmatprep.subr.mxu0 0.0
        %485 = vmatpush1.msra.mxu0 0.0
        %486 = vmatprep.subr.mxu0 0.0
        %487 = vmatpush1.msra.mxu0 0.0
        %488 = vmatprep.subr.mxu0 0.0
        %489 = vmatpush1.msra.mxu0 0.0
        %490 = vmatprep.subr.mxu0 0.0
        %491 = vmatpush1.msra.mxu0 0.0
        %492 = vmatprep.subr.mxu0 0.0
        %493 = vmatpush1.msra.mxu0 %v447
        %494 = vmatprep.subr.mxu0 0.0
        %495 = vmatpush2.msra.mxu0 0.0
        %496 = vmatprep.subr.mxu0 0.0
        %497 = vmatpush2.msra.mxu0 0.0
        %498 = vmatprep.subr.mxu0 0.0
        %499 = vmatpush2.msra.mxu0 0.0
        %500 = vmatprep.subr.mxu0 0.0
        %501 = vmatpush2.msra.mxu0 0.0
        %502 = vmatprep.subr.mxu0 0.0
        %503 = vmatpush2.msra.mxu0 0.0
        %504 = vmatprep.subr.mxu0 0.0
        %505 = vmatpush2.msra.mxu0 0.0
        %506 = vmatprep.subr.mxu0 0.0
        %507 = vmatpush2.msra.mxu0 0.0
        %508 = vmatprep.subr.mxu0 0.0
        %509 = vmatpush2.msra.mxu0 0.0
        %510 = vmatprep.subr.mxu0 0.0
        %511 = vmatpush2.msra.mxu0 0.0
        %512 = vmatprep.subr.mxu0 0.0
        %513 = vmatpush2.msra.mxu0 0.0
        %514 = vmatprep.subr.mxu0 0.0
        %515 = vmatpush2.msra.mxu0 0.0
        %516 = vmatprep.subr.mxu0 0.0
        %517 = vmatpush2.msra.mxu0 0.0
        %518 = vmatprep.subr.mxu0 0.0
        %519 = vmatpush2.msra.mxu0 0.0
        %520 = vmatprep.subr.mxu0 0.0
        %521 = vmatpush2.msra.mxu0 0.0
        %522 = vmatprep.subr.mxu0 0.0
        %523 = vmatpush2.msra.mxu0 0.0
        %524 = vmatprep.subr.mxu0 0.0
        %525 = vmatpush2.msra.mxu0 0.0
        %526 = vmatprep.mubr.f32.mxu0 0.0
        %527 = vmatmul.mubr.f32.gmra.mxu0 %v457
        %v528 = vpop.f32.mrf.mxu0
        %v529 = vadd.f32 %v453, %v528
        %v530 = vpop.f32.mrf.mxu0
        %531 = vmatprep.mubr.f32.mxu0 0.0
        %532 = vmatmul.mubr.f32.gmra.mxu0 %v460
        %v533 = vpop.f32.mrf.mxu0
        %v534 = vadd.f32 %v453, %v533
        %v535 = vpop.f32.mrf.mxu0
        %536 = vdwg.mxu0
        %v537 = vld [vmem:[%s402] sm:$0xff]
        %v538 = vld [vmem:[%s402 + $0x8] sm:$0xff]
        %v539 = vld [vmem:[%s427] sm:$0xff]
        %v540 = vld [vmem:[%s430] sm:$0x1]
        %v542 = vlaneseq
        %v543 = vshrl.u32 %v542, 7
        %v544 = vsub.s32 0, %v543
        %v545 = vrot.slane %v540, %v544
        %v548 = vsel %vm455, %v537, 0
        %v551 = vsel %vm455, %v538, 0
        %553 = vmatprep.subr.mxu0 0.0
        %554 = vmatpush1.msra.mxu0 0.0
        %555 = vmatprep.subr.mxu0 0.0
        %556 = vmatpush1.msra.mxu0 0.0
        %557 = vmatprep.subr.mxu0 0.0
        %558 = vmatpush1.msra.mxu0 0.0
        %559 = vmatprep.subr.mxu0 0.0
        %560 = vmatpush1.msra.mxu0 0.0
        %561 = vmatprep.subr.mxu0 0.0
        %562 = vmatpush1.msra.mxu0 0.0
        %563 = vmatprep.subr.mxu0 0.0
        %564 = vmatpush1.msra.mxu0 0.0
        %565 = vmatprep.subr.mxu0 0.0
        %566 = vmatpush1.msra.mxu0 0.0
        %567 = vmatprep.subr.mxu0 0.0
        %568 = vmatpush1.msra.mxu0 0.0
        %569 = vmatprep.subr.mxu0 0.0
        %570 = vmatpush1.msra.mxu0 0.0
        %571 = vmatprep.subr.mxu0 0.0
        %572 = vmatpush1.msra.mxu0 0.0
        %573 = vmatprep.subr.mxu0 0.0
        %574 = vmatpush1.msra.mxu0 0.0
        %575 = vmatprep.subr.mxu0 0.0
        %576 = vmatpush1.msra.mxu0 0.0
        %577 = vmatprep.subr.mxu0 0.0
        %578 = vmatpush1.msra.mxu0 0.0
        %579 = vmatprep.subr.mxu0 0.0
        %580 = vmatpush1.msra.mxu0 0.0
        %581 = vmatprep.subr.mxu0 0.0
        %582 = vmatpush1.msra.mxu0 0.0
        %583 = vmatprep.subr.mxu0 0.0
        %584 = vmatpush1.msra.mxu0 %v539
        %585 = vmatprep.subr.mxu0 0.0
        %586 = vmatpush2.msra.mxu0 0.0
        %587 = vmatprep.subr.mxu0 0.0
        %588 = vmatpush2.msra.mxu0 0.0
        %589 = vmatprep.subr.mxu0 0.0
        %590 = vmatpush2.msra.mxu0 0.0
        %591 = vmatprep.subr.mxu0 0.0
        %592 = vmatpush2.msra.mxu0 0.0
        %593 = vmatprep.subr.mxu0 0.0
        %594 = vmatpush2.msra.mxu0 0.0
        %595 = vmatprep.subr.mxu0 0.0
        %596 = vmatpush2.msra.mxu0 0.0
        %597 = vmatprep.subr.mxu0 0.0
        %598 = vmatpush2.msra.mxu0 0.0
        %599 = vmatprep.subr.mxu0 0.0
        %600 = vmatpush2.msra.mxu0 0.0
        %601 = vmatprep.subr.mxu0 0.0
        %602 = vmatpush2.msra.mxu0 0.0
        %603 = vmatprep.subr.mxu0 0.0
        %604 = vmatpush2.msra.mxu0 0.0
        %605 = vmatprep.subr.mxu0 0.0
        %606 = vmatpush2.msra.mxu0 0.0
        %607 = vmatprep.subr.mxu0 0.0
        %608 = vmatpush2.msra.mxu0 0.0
        %609 = vmatprep.subr.mxu0 0.0
        %610 = vmatpush2.msra.mxu0 0.0
        %611 = vmatprep.subr.mxu0 0.0
        %612 = vmatpush2.msra.mxu0 0.0
        %613 = vmatprep.subr.mxu0 0.0
        %614 = vmatpush2.msra.mxu0 0.0
        %615 = vmatprep.subr.mxu0 0.0
        %616 = vmatpush2.msra.mxu0 0.0
        %617 = vmatprep.mubr.f32.mxu0 0.0
        %618 = vmatmul.mubr.f32.gmra.mxu0 %v548
        %v619 = vpop.f32.mrf.mxu0
        %v620 = vadd.f32 %v545, %v619
        %v621 = vpop.f32.mrf.mxu0
        %622 = vmatprep.mubr.f32.mxu0 0.0
        %623 = vmatmul.mubr.f32.gmra.mxu0 %v551
        %v624 = vpop.f32.mrf.mxu0
        %v625 = vadd.f32 %v545, %v624
        %v626 = vpop.f32.mrf.mxu0
        %627 = vdwg.mxu0
        %v628 = vpack.c.bf16 %v534, %v529
        %v629 = vpack.c.bf16 %v625, %v620
        %vm630 = vcmask 261120
        %v632 = vsel %vm630, %v628, 0
        %v635 = vsel %vm630, %v629, 0
        %637 = vmatprep.subr.bf16.mxu0 0
        %638 = vmatpush1.bf16.xpose.msra.mxu0 0
        %639 = vmatprep.subr.bf16.mxu0 0
        %640 = vmatpush1.bf16.xpose.msra.mxu0 0
        %641 = vmatprep.subr.bf16.mxu0 0
        %642 = vmatpush1.bf16.xpose.msra.mxu0 0
        %643 = vmatprep.subr.bf16.mxu0 0
        %644 = vmatpush1.bf16.xpose.msra.mxu0 0
        %645 = vmatprep.subr.bf16.mxu0 0
        %646 = vmatpush1.bf16.xpose.msra.mxu0 0
        %647 = vmatprep.subr.bf16.mxu0 0
        %648 = vmatpush1.bf16.xpose.msra.mxu0 0
        %649 = vmatprep.subr.bf16.mxu0 0
        %650 = vmatpush1.bf16.xpose.msra.mxu0 0
        %651 = vmatprep.subr.bf16.mxu0 0
        %652 = vmatpush1.bf16.xpose.msra.mxu0 %v635
        %653 = vmatprep.subr.bf16.mxu0 0
        %654 = vmatpush2.bf16.xpose.msra.mxu0 0
        %655 = vmatprep.subr.bf16.mxu0 0
        %656 = vmatpush2.bf16.xpose.msra.mxu0 0
        %657 = vmatprep.subr.bf16.mxu0 0
        %658 = vmatpush2.bf16.xpose.msra.mxu0 0
        %659 = vmatprep.subr.bf16.mxu0 0
        %660 = vmatpush2.bf16.xpose.msra.mxu0 0
        %661 = vmatprep.subr.bf16.mxu0 0
        %662 = vmatpush2.bf16.xpose.msra.mxu0 0
        %663 = vmatprep.subr.bf16.mxu0 0
        %664 = vmatpush2.bf16.xpose.msra.mxu0 0
        %665 = vmatprep.subr.bf16.mxu0 0
        %666 = vmatpush2.bf16.xpose.msra.mxu0 0
        %667 = vmatprep.subr.bf16.mxu0 0
        %668 = vmatpush2.bf16.xpose.msra.mxu0 0
        %669 = vmatprep.mubr.bf16.mxu0 0
        %670 = vmatmul.mubr.bf16.gmra.mxu0 %v632
        %v671 = vpop.f32.mrf.mxu0
        %v672 = vadd.f32 0.0, %v671
        %v673 = vpop.f32.mrf.mxu0
        %v674 = vpop.f32.mrf.mxu0
        %v675 = vadd.f32 0.0, %v674
        %v676 = vpop.f32.mrf.mxu0
        %677 = vdwg.mxu0
        %v678 = vld [vmem:[%s415] sm:$0xf]
        %v679 = vld [vmem:[%s415 + $0x4] sm:$0xf]
        %v680 = vunpack.c.l.bf16 %v678
        %v681 = vunpack.c.l.bf16 %v679
        %v682 = vld [vmem:[#allocation2] sm:$0xff]
        %v683 = vld [vmem:[#allocation2 + $0x8] sm:$0xff]
        %vm684 = vcmask 130048
        %v685 = vsel %vm684, %v672, -inf
        %686 = vmax.xlane.f32.xlu0 %v685
        %v687 = vpop.xlane.xlu0 %686
        %v688 = vsel %vm684, %v675, -inf
        %689 = vmax.xlane.f32.xlu0 %v688
        %v690 = vpop.xlane.xlu0 %689
        %v691 = vmax.f32 %v682, %v687
        %v692 = vmax.f32 %v683, %v690
        %v693 = vsub.f32 %v682, %v691
        %v694 = vsub.f32 %v683, %v692
        %v695 = vmul.f32 %v693, 1.442695
        %v696 = vpow.pop %v695
        %v697 = vmul.f32 %v694, 1.442695
        %v698 = vpow.pop %v697
        %700 = vset.pattern.permute.xlu0 0
        %701 = vperm.xlu0 %700, %v691
        %v702 = vpop.permute.xlu0 %701
        %705 = vset.pattern.permute.xlu0 0
        %706 = vperm.xlu0 %705, %v692
        %v707 = vpop.permute.xlu0 %706
        %v709 = vsub.f32 %v672, %v702
        %v710 = vsub.f32 %v675, %v707
        %v711 = vmul.f32 %v709, 1.442695
        %v712 = vpow.pop %v711
        %v713 = vmul.f32 %v710, 1.442695
        %v714 = vpow.pop %v713
        %v715 = vmul.f32 %v712, %v680
        %v716 = vmul.f32 %v714, %v681
        %v717 = vld [vmem:[#allocation3] sm:$0xff]
        %v718 = vld [vmem:[#allocation3 + $0x8] sm:$0xff]
        %v719 = vmul.f32 %v696, %v717
        %v720 = vmul.f32 %v698, %v718
        %v721 = vsel %vm684, %v715, 0.0
        %722 = vadd.xlane.f32.xlu0 %v721
        %v723 = vpop.xlane.xlu0 %722
        %v724 = vsel %vm684, %v716, 0.0
        %725 = vadd.xlane.f32.xlu0 %v724
        %v726 = vpop.xlane.xlu0 %725
        %v727 = vadd.f32 %v719, %v723
        %v728 = vadd.f32 %v720, %v726
        %vm729 = vcmask 7168
        %730 = vst.msk [vmem:[#allocation3] sm:$0xff] %vm729, %v727
        %731 = vst.msk [vmem:[#allocation3 + $0x8] sm:$0xff] %vm729, %v728
        %v732 = vld [vmem:[#allocation4] sm:$0xff]
        %v733 = vld [vmem:[#allocation4 + $0x8] sm:$0xff]
        %735 = vset.pattern.permute.xlu0 0
        %736 = vperm.xlu0 %735, %v696
        %v737 = vpop.permute.xlu0 %736
        %740 = vset.pattern.permute.xlu0 0
        %741 = vperm.xlu0 %740, %v698
        %v742 = vpop.permute.xlu0 %741
        %v744 = vmul.f32 %v737, %v732
        %v745 = vmul.f32 %v742, %v733
        %v746 = vpack.c.bf16 %v716, %v715
        %748 = vrot.lane.b32.xlu0 %v629, 96
        %v749 = vpop.permute.xlu0 %748
        %v752 = vsel %vm684, %v746, 0
        %754 = vmatprep.subr.bf16.mxu0 0
        %755 = vmatpush1.bf16.msra.mxu0 0
        %756 = vmatprep.subr.bf16.mxu0 0
        %757 = vmatpush1.bf16.msra.mxu0 0
        %758 = vmatprep.subr.bf16.mxu0 0
        %759 = vmatpush1.bf16.msra.mxu0 0
        %760 = vmatprep.subr.bf16.mxu0 0
        %761 = vmatpush1.bf16.msra.mxu0 0
        %762 = vmatprep.subr.bf16.mxu0 0
        %763 = vmatpush1.bf16.msra.mxu0 0
        %764 = vmatprep.subr.bf16.mxu0 0
        %765 = vmatpush1.bf16.msra.mxu0 0
        %766 = vmatprep.subr.bf16.mxu0 0
        %767 = vmatpush1.bf16.msra.mxu0 0
        %768 = vmatprep.subr.bf16.mxu0 0
        %769 = vmatpush1.bf16.msra.mxu0 %v749
        %770 = vmatprep.subr.bf16.mxu0 0
        %771 = vmatpush2.bf16.msra.mxu0 0
        %772 = vmatprep.subr.bf16.mxu0 0
        %773 = vmatpush2.bf16.msra.mxu0 0
        %774 = vmatprep.subr.bf16.mxu0 0
        %775 = vmatpush2.bf16.msra.mxu0 0
        %776 = vmatprep.subr.bf16.mxu0 0
        %777 = vmatpush2.bf16.msra.mxu0 0
        %778 = vmatprep.subr.bf16.mxu0 0
        %779 = vmatpush2.bf16.msra.mxu0 0
        %780 = vmatprep.subr.bf16.mxu0 0
        %781 = vmatpush2.bf16.msra.mxu0 0
        %782 = vmatprep.subr.bf16.mxu0 0
        %783 = vmatpush2.bf16.msra.mxu0 0
        %784 = vmatprep.subr.bf16.mxu0 0
        %785 = vmatpush2.bf16.msra.mxu0 0
        %786 = vmatprep.mubr.bf16.mxu0 0
        %787 = vmatmul.mubr.bf16.gmra.mxu0 %v752
        %v788 = vpop.f32.mrf.mxu0
        %v789 = vadd.f32 0.0, %v788
        %v790 = vpop.f32.mrf.mxu0
        %v791 = vpop.f32.mrf.mxu0
        %v792 = vadd.f32 0.0, %v791
        %v793 = vpop.f32.mrf.mxu0
        %794 = vdwg.mxu0
        %v795 = vadd.f32 %v744, %v789
        %v796 = vadd.f32 %v745, %v792
        %797 = vst.msk [vmem:[#allocation4] sm:$0xff] %vm630, %v795
        %798 = vst.msk [vmem:[#allocation4 + $0x8] sm:$0xff] %vm630, %v796
        %799 = vst.msk [vmem:[#allocation2] sm:$0xff] %vm729, %v691
        %800 = vst.msk [vmem:[#allocation2 + $0x8] sm:$0xff] %vm729, %v692
        // Predicated region
        $region53: #{tpu_custom_call.1} parent=47 // pred_check
          %p801 = pneg %p433
        $region54: #{tpu_custom_call.1} parent=47 // pred_check_branch
          %803 = sbr.rel (%p801) target = $region56
        $region55: #{tpu_custom_call.1} parent=47 // pred_region
          %v804 = vld [vmem:[#allocation3] sm:$0xff]
          %v805 = vld [vmem:[#allocation3 + $0x8] sm:$0xff]
          %v806 = vmax.f32 %v804, 1e-16
          %v807 = vmax.f32 %v805, 1e-16
          %v808 = vrcp.pop %v806
          %v809 = vrcp.pop %v807
          %v810 = vld [vmem:[#allocation4] sm:$0xff]
          %v811 = vld [vmem:[#allocation4 + $0x8] sm:$0xff]
          %813 = vset.pattern.permute.xlu0 0
          %814 = vperm.xlu0 %813, %v808
          %v815 = vpop.permute.xlu0 %814
          %818 = vset.pattern.permute.xlu0 0
          %819 = vperm.xlu0 %818, %v809
          %v820 = vpop.permute.xlu0 %819
          %v822 = vmul.f32 %v810, %v815
          %v823 = vmul.f32 %v811, %v820
          %826 = vrot.lane.b32.xlu0 %v529, 96
          %v827 = vpop.permute.xlu0 %826
          %828 = vrot.lane.b32.xlu0 %v534, 96
          %v829 = vpop.permute.xlu0 %828
          %v832 = vadd.f32 %v822, %v827
          %v833 = vadd.f32 %v823, %v829
          %834 = vst.msk [vmem:[%s391] sm:$0xff] %vm630, %v832
          %835 = vst.msk [vmem:[%s391 + $0x8] sm:$0xff] %vm630, %v833
        $region56: #{tpu_custom_call.1} parent=47 // pred_fallthru
          _
        %s836 = sand.u32 %s236, 1
        %s837 = scalar_lea.sflag [#allocation6], %s836
        %s838 = sand.u32 %s236, 1
        %s839 = smul.addr %s838, 16
        %s840 = scalar_lea.vmem [#allocation5], %s839
        // Predicated region
        $region57: #{tpu_custom_call.1} parent=47 // pred_check
          %p841 = pneg %p246
        $region58: #{tpu_custom_call.1} parent=47 // pred_check_branch
          %843 = sbr.rel (%p841) target = $region60
        $region59: #{tpu_custom_call.1} parent=47 // pred_region
          %s844 = smul.u32 2, %s27
          %s846 = ssub.s32 256, 256
          %847 = vsyncadd %s837, %s846
          %s848 = smul.addr %s26, 2
          %s849 = sadd.s32 %s844, %s848
          %s850 = smul.addr %s849, 128
          %s851 = scalar_lea.hbm %s7, %s850
          %s852 = sshll.u32 %s840, 4
          %s853 = int_to_ptr.vmem [resolvable:$true] %s852
          %858 = dma.vmem_to_hbm [thread:$0]  %s853, 256, %s851, %s837, 128, 128, 8
        $region60: #{tpu_custom_call.1} parent=47 // pred_fallthru
          _
      $region48: #{tpu_custom_call.1} parent=5 // pred_fallthru
        _
      %p859 = scmp.le.s32.totalorder 2, %s16
      // Predicated region
      $region61: #{tpu_custom_call.1} parent=5 // pred_check
        %p860 = pneg %p859
      $region62: #{tpu_custom_call.1} parent=5 // pred_check_branch
        %862 = sbr.rel (%p860) target = $region64
      $region63: #{tpu_custom_call.1} parent=5 // pred_region
        %s863 = ssub.s32 %s16, 2
        // Predicated region
        $region65: #{tpu_custom_call.1} parent=63 // pred_check
          %p864 = pneg %p252
        $region66: #{tpu_custom_call.1} parent=63 // pred_check_branch
          %866 = sbr.rel (%p864) target = $region68
        $region67: #{tpu_custom_call.1} parent=63 // pred_region
          %s867 = sand.u32 %s237, 1
          %s868 = scalar_lea.sflag [#allocation6], %s867
          %s869 = sand.u32 %s237, 1
          %s870 = smul.addr %s869, 16
          %s871 = scalar_lea.vmem [#allocation5], %s870
          %872 = dma.done %s868, 256
        $region68: #{tpu_custom_call.1} parent=63 // pred_fallthru
          _
      $region64: #{tpu_custom_call.1} parent=5 // pred_fallthru
        _
    $region6: #{tpu_custom_call.1} parent=1 // loop_footer
      %s20 = sadd.s32 1, %s16
    $region7: #{tpu_custom_call.1} parent=1 // loop_footer_branch
      %15 = sbr.rel target = $region3
    $region8: #{tpu_custom_call.1} parent=1 // loop_exit
      _
    %873 = vsyncpa [#allocation6], 1
    %s874 = scalar_lea.sflag [#allocation6], 1
    %875 = vsyncpa %s874, 1

</llo_original>
